<compile_context>
chip_gen: v5e
topology: v5e:2x2
jax: 0.10.0
libtpu: 0.0.40
codegen_flags: <defaults>
</compile_context>

<pallas_src>
import math
import functools

import jax
import jax.numpy as jnp
from jax.experimental import pallas as pl
from jax.experimental.pallas import tpu as pltpu


_NEG_BIG = -1e30  # finite mask value: avoids NaN from (-inf) - (-inf) in online softmax


def _layernorm(x, gamma, beta, eps=1e-5):
    # single-pass statistics: var = E[x^2] - mu^2  (one fewer cross-lane reduction)
    mu = jnp.mean(x, axis=-1, keepdims=True)
    ms = jnp.mean(x * x, axis=-1, keepdims=True)
    var = ms - mu * mu
    return (x - mu) * jax.lax.rsqrt(var + eps) * gamma + beta


# ---------------------------------------------------------------------------
# kernel 1: LN1 + fused QKV projection
# ---------------------------------------------------------------------------
def qkv_kernel(x_ref, g_ref, b_ref, w_ref, bias_ref, o_ref):
    x = x_ref[0]                                            # (TQ, C) f32
    h = _layernorm(x, g_ref[...], b_ref[...])
    qkv = jnp.dot(h.astype(jnp.bfloat16), w_ref[...],       # bf16 x bf16 -> f32 acc
                  preferred_element_type=jnp.float32) + bias_ref[...]
    o_ref[0] = qkv.astype(jnp.bfloat16)                     # (TQ, 3C) bf16


# ---------------------------------------------------------------------------
# kernel 2: flash-style causal attention (online softmax over KV tiles)
# ---------------------------------------------------------------------------
def flash_attn_kernel(q_ref, k_ref, v_ref, o_ref, m_ref, l_ref, acc_ref, *, tq, tkv):
    qi = pl.program_id(1)
    ki = pl.program_id(2)

    @pl.when(ki == 0)
    def _():
        m_ref[...] = jnp.full(m_ref.shape, _NEG_BIG, jnp.float32)
        l_ref[...] = jnp.zeros(l_ref.shape, jnp.float32)
        acc_ref[...] = jnp.zeros(acc_ref.shape, jnp.float32)

    # skip KV blocks that lie entirely in the causal future of this Q block
    @pl.when(ki * tkv < (qi + 1) * tq)
    def _():
        q = q_ref[0]                                        # (H, TQ, dh)  bf16 (pre-scaled)
        k = k_ref[0]                                        # (H, TKV, dh) bf16
        v = v_ref[0]                                        # (H, TKV, dh) bf16

        # all heads in one batched MXU contraction
        s = jax.lax.dot_general(q, k, (((2,), (2,)), ((0,), (0,))),
                                preferred_element_type=jnp.float32)   # (H, TQ, TKV)

        row = qi * tq + jax.lax.broadcasted_iota(jnp.int32, s.shape, 1)
        col = ki * tkv + jax.lax.broadcasted_iota(jnp.int32, s.shape, 2)
        s = jnp.where(row >= col, s, _NEG_BIG)              # causal mask (finite fill)

        m_prev = m_ref[...]
        m_new = jnp.maximum(m_prev, jnp.max(s, axis=-1, keepdims=True))
        alpha = jnp.exp(m_prev - m_new)
        p = jnp.exp(s - m_new)
        l_ref[...] = alpha * l_ref[...] + jnp.sum(p, axis=-1, keepdims=True)
        acc_ref[...] = alpha * acc_ref[...] + jax.lax.dot_general(
            p.astype(v.dtype), v, (((2,), (1,)), ((0,), (0,))),
            preferred_element_type=jnp.float32)             # (H, TQ, dh)
        m_ref[...] = m_new

    @pl.when(ki == pl.num_programs(2) - 1)
    def _():
        inv_l = pl.reciprocal(l_ref[...], approx=True)      # EUP, frees VALU slots
        o_ref[0] = (acc_ref[...] * inv_l).astype(o_ref.dtype)


# ---------------------------------------------------------------------------
# kernel 3: out-projection + residual + LN2 + H-tiled MLP + residual
# ---------------------------------------------------------------------------
def out_mlp_kernel(y_ref, x_ref, wp_ref, bp_ref, g2_ref, be2_ref,
                   w1_ref, b1_ref, w2_ref, b2_ref, o_ref, h_ref, acc_ref):
    j = pl.program_id(2)

    @pl.when(j == 0)
    def _():
        proj = jnp.dot(y_ref[0], wp_ref[...],
                       preferred_element_type=jnp.float32) + bp_ref[...]
        x1 = x_ref[0] + proj                                # attention residual (f32)
        h = _layernorm(x1, g2_ref[...], be2_ref[...])
        h_ref[...] = h.astype(jnp.bfloat16)                 # cached for every H tile
        acc_ref[...] = x1 + b2_ref[...]                     # second residual + final bias

    mid = jnp.dot(h_ref[...], w1_ref[...],
                  preferred_element_type=jnp.float32) + b1_ref[...]   # (TQ, TH)
    mid = jax.nn.gelu(mid, approximate=False)               # exact erf GELU == nn.GELU
    acc_ref[...] += jnp.dot(mid.astype(jnp.bfloat16), w2_ref[...],
                            preferred_element_type=jnp.float32)

    @pl.when(j == pl.num_programs(2) - 1)
    def _():
        o_ref[0] = acc_ref[...]


# ---------------------------------------------------------------------------
# wrapper
# ---------------------------------------------------------------------------
def transformer_block(x, params, n_head, *, tq=128, tkv=128, th=512,
                      vmem_limit_bytes=48 * 1024 * 1024):
    (ln1_g, ln1_b, ln2_g, ln2_b,
     wq, bq, wk, bk, wv, bv, wp, bp, w1, b1, w2, b2) = params

    B, T, C = x.shape
    H = w1.shape[1]
    assert C % n_head == 0
    dh = C // n_head

    tq, tkv, th = min(tq, T), min(tkv, T), min(th, H)
    assert T % tq == 0 and T % tkv == 0 and H % th == 0
    nq, nkv, nh_blk = T // tq, T // tkv, H // th

    f32, bf16 = jnp.float32, jnp.bfloat16
    scale = 1.0 / math.sqrt(dh)

    # ---- parameter packing: bf16 MXU operands, f32 biases / LN params ----
    wqkv = jnp.concatenate([wq * scale, wk, wv], axis=1).astype(bf16)     # (C, 3C)
    bqkv = jnp.concatenate([bq * scale, bk, bv]).reshape(1, 3 * C).astype(f32)
    g1, be1 = ln1_g.reshape(1, C).astype(f32), ln1_b.reshape(1, C).astype(f32)
    g2, be2 = ln2_g.reshape(1, C).astype(f32), ln2_b.reshape(1, C).astype(f32)
    wp_b, bp2 = wp.astype(bf16), bp.reshape(1, C).astype(f32)
    w1_b, b1_2 = w1.astype(bf16), b1.reshape(1, H).astype(f32)
    w2_b, b2_2 = w2.astype(bf16), b2.reshape(1, C).astype(f32)
    x = x.astype(f32)

    # ---------------- kernel 1: LN1 + QKV projection ----------------
    qkv = pl.pallas_call(
        qkv_kernel,
        grid=(B, nq),
        in_specs=[
            pl.BlockSpec((1, tq, C), lambda b, i: (b, i, 0)),
            pl.BlockSpec((1, C), lambda b, i: (0, 0)),
            pl.BlockSpec((1, C), lambda b, i: (0, 0)),
            pl.BlockSpec((C, 3 * C), lambda b, i: (0, 0)),
            pl.BlockSpec((1, 3 * C), lambda b, i: (0, 0)),
        ],
        out_specs=pl.BlockSpec((1, tq, 3 * C), lambda b, i: (b, i, 0)),
        out_shape=jax.ShapeDtypeStruct((B, T, 3 * C), bf16),
        compiler_params=pltpu.CompilerParams(
            dimension_semantics=("parallel", "parallel"),
            vmem_limit_bytes=vmem_limit_bytes),
    )(x, g1, be1, wqkv, bqkv)

    # head split to (B, n_head, T, dh) in plain XLA (layout plumbing only)
    qkv = qkv.reshape(B, T, 3, n_head, dh).transpose(2, 0, 3, 1, 4)
    q, k, v = qkv[0], qkv[1], qkv[2]

    # --------- kernel 2: flash causal attention (online softmax) ----------
    if tq == tkv:
        # clamp the KV block index so skipped (future) blocks re-use the
        # previous block and cost no DMA
        kv_map = lambda b, qi, ki: (b, 0, jnp.minimum(ki, qi), 0)
    else:
        kv_map = lambda b, qi, ki: (b, 0, ki, 0)

    ctx = pl.pallas_call(
        functools.partial(flash_attn_kernel, tq=tq, tkv=tkv),
        grid=(B, nq, nkv),
        in_specs=[
            pl.BlockSpec((1, n_head, tq, dh), lambda b, qi, ki: (b, 0, qi, 0)),
            pl.BlockSpec((1, n_head, tkv, dh), kv_map),
            pl.BlockSpec((1, n_head, tkv, dh), kv_map),
        ],
        out_specs=pl.BlockSpec((1, n_head, tq, dh), lambda b, qi, ki: (b, 0, qi, 0)),
        out_shape=jax.ShapeDtypeStruct((B, n_head, T, dh), bf16),
        scratch_shapes=[
            pltpu.VMEM((n_head, tq, 1), f32),    # running max
            pltpu.VMEM((n_head, tq, 1), f32),    # running sum
            pltpu.VMEM((n_head, tq, dh), f32),   # running PV accumulator
        ],
        compiler_params=pltpu.CompilerParams(
            dimension_semantics=("parallel", "parallel", "arbitrary"),
            vmem_limit_bytes=vmem_limit_bytes),
    )(q, k, v)

    # head merge back to (B, T, C) in plain XLA
    y = ctx.transpose(0, 2, 1, 3).reshape(B, T, C)

    # ------- kernel 3: out-proj + residual + LN2 + H-tiled MLP + residual -------
    out = pl.pallas_call(
        out_mlp_kernel,
        grid=(B, nq, nh_blk),
        in_specs=[
            pl.BlockSpec((1, tq, C), lambda b, i, j: (b, i, 0)),   # attention context
            pl.BlockSpec((1, tq, C), lambda b, i, j: (b, i, 0)),   # residual stream x
            pl.BlockSpec((C, C), lambda b, i, j: (0, 0)),          # Wproj
            pl.BlockSpec((1, C), lambda b, i, j: (0, 0)),          # bproj
            pl.BlockSpec((1, C), lambda b, i, j: (0, 0)),          # ln2 gamma
            pl.BlockSpec((1, C), lambda b, i, j: (0, 0)),          # ln2 beta
            pl.BlockSpec((C, th), lambda b, i, j: (0, j)),         # W1 tile
            pl.BlockSpec((1, th), lambda b, i, j: (0, j)),         # b1 tile
            pl.BlockSpec((th, C), lambda b, i, j: (j, 0)),         # W2 tile
            pl.BlockSpec((1, C), lambda b, i, j: (0, 0)),          # b2
        ],
        out_specs=pl.BlockSpec((1, tq, C), lambda b, i, j: (b, i, 0)),
        out_shape=jax.ShapeDtypeStruct((B, T, C), f32),
        scratch_shapes=[
            pltpu.VMEM((tq, C), bf16),           # cached bf16 LN2 activations
            pltpu.VMEM((tq, C), f32),            # MLP accumulator (+ residuals)
        ],
        compiler_params=pltpu.CompilerParams(
            dimension_semantics=("parallel", "parallel", "arbitrary"),
            vmem_limit_bytes=vmem_limit_bytes),
    )(y, x, wp_b, bp2, g2, be2, w1_b, b1_2, w2_b, b2_2)

    return out


# ---------------- pure-JAX f32 reference (for verification) ----------------
def reference_block(x, params, n_head):
    (g1, be1, g2, be2, wq, bq, wk, bk, wv, bv, wp, bp, w1, b1, w2, b2) = params
    B, T, C = x.shape
    dh = C // n_head

    def ln(z, g, b):
        mu = jnp.mean(z, axis=-1, keepdims=True)
        var = jnp.mean((z - mu) ** 2, axis=-1, keepdims=True)
        return (z - mu) / jnp.sqrt(var + 1e-5) * g + b

    h = ln(x, g1, be1)
    q = (h @ wq + bq).reshape(B, T, n_head, dh).transpose(0, 2, 1, 3)
    k = (h @ wk + bk).reshape(B, T, n_head, dh).transpose(0, 2, 1, 3)
    v = (h @ wv + bv).reshape(B, T, n_head, dh).transpose(0, 2, 1, 3)
    att = jnp.einsum('bhqd,bhkd->bhqk', q, k) / math.sqrt(dh)
    mask = jnp.tril(jnp.ones((T, T), dtype=bool))
    att = jnp.where(mask, att, -jnp.inf)
    att = jax.nn.softmax(att, axis=-1)
    y = jnp.einsum('bhqk,bhkd->bhqd', att, v).transpose(0, 2, 1, 3).reshape(B, T, C)
    x = x + y @ wp + bp
    h2 = ln(x, g2, be2)
    return x + jax.nn.gelu(h2 @ w1 + b1, approximate=False) @ w2 + b2


if __name__ == "__main__":
    # small config (block_size == T); chosen so every tiling axis has >1 step
    B, T, C, n_head = 2, 32, 64, 4          # dh = 16
    H = 4 * C                               # 256

    key = jax.random.PRNGKey(0)
    ks = jax.random.split(key, 20)

    def w(k, shape, s=0.02):
        return (s * jax.random.normal(k, shape)).astype(jnp.float32)

    params = (
        1.0 + w(ks[0], (C,), 0.1), w(ks[1], (C,), 0.1),     # ln1 gamma / beta
        1.0 + w(ks[2], (C,), 0.1), w(ks[3], (C,), 0.1),     # ln2 gamma / beta
        w(ks[4], (C, C)), w(ks[5], (C,)),                   # Wq, bq
        w(ks[6], (C, C)), w(ks[7], (C,)),                   # Wk, bk
        w(ks[8], (C, C)), w(ks[9], (C,)),                   # Wv, bv
        w(ks[10], (C, C)), w(ks[11], (C,)),                 # Wproj, bproj
        w(ks[12], (C, H)), w(ks[13], (H,)),                 # W1, b1
        w(ks[14], (H, C)), w(ks[15], (C,)),                 # W2, b2
    )
    x = jax.random.normal(ks[16], (B, T, C), dtype=jnp.float32)

    out = transformer_block(x, params, n_head, tq=16, tkv=16, th=128)
    out = jax.block_until_ready(out)

    ref = reference_block(x, params, n_head)
    assert out.shape == (B, T, C)
    err = float(jnp.max(jnp.abs(out - ref)))
    # bf16 MXU operands + approx reciprocal => compare at bf16-level tolerance
    assert jnp.allclose(out, ref, atol=3e-3, rtol=3e-3), f"max abs err = {err}"

    print("KERNEL_OK")
</pallas_src>

<mosaic_0001>
module attributes {stable_mosaic.version = 11 : i64} {
  func.func @qkv_kernel(%arg0: i32, %arg1: i32, %arg2: memref<1x16x64xf32, #tpu.memory_space<vmem>>, %arg3: memref<1x64xf32, #tpu.memory_space<vmem>>, %arg4: memref<1x64xf32, #tpu.memory_space<vmem>>, %arg5: memref<64x192xbf16, #tpu.memory_space<vmem>>, %arg6: memref<1x192xf32, #tpu.memory_space<vmem>>, %arg7: memref<1x16x192xbf16, #tpu.memory_space<vmem>>) attributes {dimension_semantics = [#tpu.dimension_semantics<parallel>, #tpu.dimension_semantics<parallel>], iteration_bounds = array<i64: 2, 2>, scalar_prefetch = 0 : i64, scratch_operands = 0 : i64, tpu.core_type = #tpu.core_type<tc>, window_params = [{transform_indices = @transform_0, window_bounds = array<i64: 1, 16, 64>}, {pipeline_mode = #tpu.pipeline_mode<synchronous>, transform_indices = @transform_1, window_bounds = array<i64: 1, 64>}, {pipeline_mode = #tpu.pipeline_mode<synchronous>, transform_indices = @transform_2, window_bounds = array<i64: 1, 64>}, {pipeline_mode = #tpu.pipeline_mode<synchronous>, transform_indices = @transform_3, window_bounds = array<i64: 64, 192>}, {pipeline_mode = #tpu.pipeline_mode<synchronous>, transform_indices = @transform_4, window_bounds = array<i64: 1, 192>}, {transform_indices = @transform_5, window_bounds = array<i64: 1, 16, 192>}]} {
    %c0 = arith.constant 0 : index
    %c0_0 = arith.constant 0 : index
    %c0_1 = arith.constant 0 : index
    %0 = vector.load %arg2[%c0, %c0_0, %c0_1] : memref<1x16x64xf32, #tpu.memory_space<vmem>>, vector<1x16x64xf32>
    %1 = vector.shape_cast %0 : vector<1x16x64xf32> to vector<16x64xf32>
    %c0_2 = arith.constant 0 : index
    %c0_3 = arith.constant 0 : index
    %2 = vector.load %arg3[%c0_2, %c0_3] : memref<1x64xf32, #tpu.memory_space<vmem>>, vector<1x64xf32>
    %c0_4 = arith.constant 0 : index
    %c0_5 = arith.constant 0 : index
    %3 = vector.load %arg4[%c0_4, %c0_5] : memref<1x64xf32, #tpu.memory_space<vmem>>, vector<1x64xf32>
    %cst = arith.constant dense<0.000000e+00> : vector<16xf32>
    %4 = vector.multi_reduction <add>, %1, %cst [1] : vector<16x64xf32> to vector<16xf32>
    %5 = vector.shape_cast %4 : vector<16xf32> to vector<16x1xf32>
    %cst_6 = arith.constant 6.400000e+01 : f32
    %6 = vector.broadcast %cst_6 : f32 to vector<16x1xf32>
    %7 = arith.divf %5, %6 : vector<16x1xf32>
    %8 = arith.mulf %1, %1 : vector<16x64xf32>
    %cst_7 = arith.constant dense<0.000000e+00> : vector<16xf32>
    %9 = vector.multi_reduction <add>, %8, %cst_7 [1] : vector<16x64xf32> to vector<16xf32>
    %10 = vector.shape_cast %9 : vector<16xf32> to vector<16x1xf32>
    %cst_8 = arith.constant 6.400000e+01 : f32
    %11 = vector.broadcast %cst_8 : f32 to vector<16x1xf32>
    %12 = arith.divf %10, %11 : vector<16x1xf32>
    %13 = arith.mulf %7, %7 : vector<16x1xf32>
    %14 = arith.subf %12, %13 : vector<16x1xf32>
    %15 = vector.broadcast %7 : vector<16x1xf32> to vector<16x64xf32>
    %16 = arith.subf %1, %15 : vector<16x64xf32>
    %cst_9 = arith.constant 9.99999974E-6 : f32
    %17 = vector.broadcast %cst_9 : f32 to vector<16x1xf32>
    %18 = arith.addf %14, %17 : vector<16x1xf32>
    %19 = math.rsqrt %18 : vector<16x1xf32>
    %20 = vector.broadcast %19 : vector<16x1xf32> to vector<16x64xf32>
    %21 = arith.mulf %16, %20 : vector<16x64xf32>
    %22 = vector.broadcast %2 : vector<1x64xf32> to vector<16x64xf32>
    %23 = arith.mulf %21, %22 : vector<16x64xf32>
    %24 = vector.broadcast %3 : vector<1x64xf32> to vector<16x64xf32>
    %25 = arith.addf %23, %24 : vector<16x64xf32>
    %26 = arith.truncf %25 : vector<16x64xf32> to vector<16x64xbf16>
    %c0_10 = arith.constant 0 : index
    %c0_11 = arith.constant 0 : index
    %27 = vector.load %arg5[%c0_10, %c0_11] : memref<64x192xbf16, #tpu.memory_space<vmem>>, vector<64x192xbf16>
    %cst_12 = arith.constant dense<0.000000e+00> : vector<16x192xf32>
    %28 = tpu.matmul %26, %27, %cst_12 {dimension_numbers = #tpu.dot_dimension_numbers<[1], [0], [0], [1], [0, 0, 1, 1], [], []>} : vector<16x64xbf16>, vector<64x192xbf16>, vector<16x192xf32> -> vector<16x192xf32>
    %c0_13 = arith.constant 0 : index
    %c0_14 = arith.constant 0 : index
    %29 = vector.load %arg6[%c0_13, %c0_14] : memref<1x192xf32, #tpu.memory_space<vmem>>, vector<1x192xf32>
    %30 = vector.broadcast %29 : vector<1x192xf32> to vector<16x192xf32>
    %31 = arith.addf %28, %30 : vector<16x192xf32>
    %32 = arith.truncf %31 : vector<16x192xf32> to vector<16x192xbf16>
    %c0_15 = arith.constant 0 : index
    %c0_16 = arith.constant 0 : index
    %c0_17 = arith.constant 0 : index
    %33 = vector.load %arg7[%c0_15, %c0_16, %c0_17] : memref<1x16x192xbf16, #tpu.memory_space<vmem>>, vector<1x16x192xbf16>
    %34 = vector.shape_cast %33 : vector<1x16x192xbf16> to vector<16x192xbf16>
    %35 = vector.shape_cast %32 : vector<16x192xbf16> to vector<1x16x192xbf16>
    tpu.vector_store %arg7[%c0_15, %c0_16, %c0_17], %35 {strides = array<i32>} : memref<1x16x192xbf16, #tpu.memory_space<vmem>>, vector<1x16x192xbf16>,
    return
  }
  func.func @transform_0(%arg0: i32, %arg1: i32) -> (i32, i32, i32) {
    %c0_i32 = arith.constant 0 : i32
    %c0_i32_0 = arith.constant 0 : i32
    return %arg0, %arg1, %c0_i32 : i32, i32, i32
  }
  func.func @transform_1(%arg0: i32, %arg1: i32) -> (i32, i32) {
    %c0_i32 = arith.constant 0 : i32
    %c0_i32_0 = arith.constant 0 : i32
    %c0_i32_1 = arith.constant 0 : i32
    return %c0_i32, %c0_i32_0 : i32, i32
  }
  func.func @transform_2(%arg0: i32, %arg1: i32) -> (i32, i32) {
    %c0_i32 = arith.constant 0 : i32
    %c0_i32_0 = arith.constant 0 : i32
    %c0_i32_1 = arith.constant 0 : i32
    return %c0_i32, %c0_i32_0 : i32, i32
  }
  func.func @transform_3(%arg0: i32, %arg1: i32) -> (i32, i32) {
    %c0_i32 = arith.constant 0 : i32
    %c0_i32_0 = arith.constant 0 : i32
    %c0_i32_1 = arith.constant 0 : i32
    return %c0_i32, %c0_i32_0 : i32, i32
  }
  func.func @transform_4(%arg0: i32, %arg1: i32) -> (i32, i32) {
    %c0_i32 = arith.constant 0 : i32
    %c0_i32_0 = arith.constant 0 : i32
    %c0_i32_1 = arith.constant 0 : i32
    return %c0_i32, %c0_i32_0 : i32, i32
  }
  func.func @transform_5(%arg0: i32, %arg1: i32) -> (i32, i32, i32) {
    %c0_i32 = arith.constant 0 : i32
    %c0_i32_0 = arith.constant 0 : i32
    return %arg0, %arg1, %c0_i32 : i32, i32, i32
  }
}

</mosaic_0001>

<llo_original>
// kernel: tpu_custom_call.1
$region0: #{tpu_custom_call.1}
  #allocation0 [shape = 'u32[]', space=smem, size = 0x4, offset = 0x4, fixed_abs, tag = 'smem constant byte address 0x4 - core index']
  #allocation1 [shape = 'u32[72,128]{1,0:T(1,128)}', space=vmem, size = 0x9000, scoped, tag = 'internal scratch']
  %s0 = inlined_call_operand.hbm [shape: f32[2,32,64], index: 0, kind: input, shape index: {}]
  %s1 = inlined_call_operand.hbm [shape: f32[1,64], index: 1, kind: input, shape index: {}]
  %s2 = inlined_call_operand.vmem [shape: f32[1,64], index: 2, kind: input, shape index: {}]
  %s3 = inlined_call_operand.hbm [shape: bf16[64,192], index: 3, kind: input, shape index: {}]
  %s4 = inlined_call_operand.vmem [shape: f32[1,192], index: 4, kind: input, shape index: {}]
  %s5 = inlined_call_operand.hbm [shape: bf16[2,32,192], index: 5, kind: output, shape index: {}]
  %s6 = sld [smem:[#allocation0]]
  $region65: #{tpu_custom_call.1} parent=0
    _
  %s8 = ssub.s32 1, %s6
  %s9 = scalar_select 0, %s8, %s6
  $region1: #{tpu_custom_call.1} parent=0
    #allocation2 [shape = 'u8[16384]{0}', space=vmem, size = 0x4000, scoped, tag = 'input window, operand 0']
    #allocation3 [shape = 's32[2]{0}', space=sflag, size = 0x8, scoped, tag = 'scoped memory for tpu_custom_call.1']
    #allocation4 [shape = 's32[2]{0}', space=sflag, size = 0x8, scoped, tag = 'scoped memory for tpu_custom_call.1']
    #allocation5 [shape = 'u8[512]{0}', space=vmem, size = 0x400, scoped, tag = 'input window, operand 1, single buffered']
    #allocation6 [shape = 's32[1]{0}', space=sflag, size = 0x4, scoped, tag = 'scoped memory for tpu_custom_call.1']
    #allocation7 [shape = 'u8[32768]{0}', space=vmem, size = 0x8000, scoped, tag = 'input window, operand 3, single buffered']
    #allocation8 [shape = 'u8[16384]{0}', space=vmem, size = 0x4000, scoped, tag = 'output window, operand 0']
    %10 = vsyncpa [#allocation3], 0
    %s11 = scalar_lea.sflag [#allocation3], 1
    %12 = vsyncpa %s11, 0
    %13 = vsyncpa [#allocation6], 0
    %14 = vsyncpa [#allocation4], 0
    %s15 = scalar_lea.sflag [#allocation4], 1
    %16 = vsyncpa %s15, 0
    loop: start=0, step=1, limit=6
    $region2: #{tpu_custom_call.1} parent=1 // loop_pre_header
      _
    $region3: #{tpu_custom_call.1} parent=1 // loop_header
      %s18 = sphi 0, %s22
      %p19 = scmp.ge.s32.totalorder %s18, 6
      %s25 = sphi 0, %s37
      %s26 = sphi 0, %s33
      %s27 = sphi 0, %s25
      %s28 = sphi 0, %s26
      %s29 = sphi 0, %s27
      %s30 = sphi 0, %s28
      %s42 = sphi 0, %s44
      %s45 = sphi 0, %s42
      %s46 = sphi 0, %s45
      %s62 = sphi 0, %s46
      %s66 = sphi 0, %s66
      %s68 = sphi 0, %s66
      %s69 = sphi 0, %s68
      %s83 = sphi 0, %s69
      %s87 = sphi 0, %s87
      %s89 = sphi 0, %s87
      %s90 = sphi 0, %s89
      %s104 = sphi 0, %s90
      %s108 = sphi 0, %s108
      %s110 = sphi 0, %s108
      %s111 = sphi 0, %s110
      %s125 = sphi 0, %s111
      %s129 = sphi 0, %s129
      %s131 = sphi 0, %s129
      %s132 = sphi 0, %s131
      %s146 = sphi 0, %s132
      %s154 = sphi 0, %s156
      %s157 = sphi 0, %s154
      %s158 = sphi 0, %s157
      %s174 = sphi 0, %s158
    $region4: #{tpu_custom_call.1} parent=1 // loop_header_branch
      %21 = sbr.rel (%p19) target = $region8
    $region5: #{tpu_custom_call.1} parent=1 // loop_body
      %s23 = ssub.s32 %s18, 1
      %s24 = ssub.s32 %s18, 2
      %s31 = sadd.s32 1, %s26
      %p32 = scmp.ge.s32.totalorder %s31, 2
      %s33 = scalar_select %p32, 0, %s31
      %s34 = sadd.s32 1, %s25
      %s35 = scalar_select %p32, %s34, %s25
      %p36 = scmp.ge.s32.totalorder %s35, 2
      %s37 = scalar_select %p36, 0, %s35
      %s38 = ssub.s32 %s25, %s37
      %s39 = ssub.s32 %s26, %s33
      %s40 = sor.u32 %s38, %s39
      %p41 = scmp.eq.s32.totalorder %s40, 0
      %s43 = sadd.s32 %s42, 1
      %s44 = scalar_select %p41, %s42, %s43
      %p47 = pneg %p41
      %p48 = scmp.eq.s32.totalorder %s18, 3
      %p49 = por %p47, %p48
      %p50 = scmp.ne.s32.totalorder %s42, %s45
      %p51 = scmp.eq.s32.totalorder %s18, 0
      %p52 = por %p50, %p51
      %p53 = scmp.ne.s32.totalorder %s42, %s45
      %p54 = scmp.eq.s32.totalorder %s23, 3
      %p55 = por %p53, %p54
      %p56 = scmp.ne.s32.totalorder %s45, %s46
      %p57 = scmp.eq.s32.totalorder %s23, 0
      %p58 = por %p56, %p57
      %p59 = scmp.ne.s32.totalorder %s45, %s46
      %p60 = scmp.eq.s32.totalorder %s24, 3
      %p61 = por %p59, %p60
      %p63 = scmp.ne.s32.totalorder %s46, %s62
      %p64 = scmp.eq.s32.totalorder %s24, 0
      %p65 = por %p63, %p64
      %s67 = sadd.s32 %s66, 1
      %p70 = scmp.eq.s32.totalorder %s18, 3
      %p71 = scmp.ne.s32.totalorder %s66, %s68
      %p72 = scmp.eq.s32.totalorder %s18, 0
      %p73 = por %p71, %p72
      %p74 = scmp.ne.s32.totalorder %s66, %s68
      %p75 = scmp.eq.s32.totalorder %s23, 3
      %p76 = por %p74, %p75
      %p77 = scmp.ne.s32.totalorder %s68, %s69
      %p78 = scmp.eq.s32.totalorder %s23, 0
      %p79 = por %p77, %p78
      %p80 = scmp.ne.s32.totalorder %s68, %s69
      %p81 = scmp.eq.s32.totalorder %s24, 3
      %p82 = por %p80, %p81
      %p84 = scmp.ne.s32.totalorder %s69, %s83
      %p85 = scmp.eq.s32.totalorder %s24, 0
      %p86 = por %p84, %p85
      %s88 = sadd.s32 %s87, 1
      %p91 = scmp.eq.s32.totalorder %s18, 3
      %p92 = scmp.ne.s32.totalorder %s87, %s89
      %p93 = scmp.eq.s32.totalorder %s18, 0
      %p94 = por %p92, %p93
      %p95 = scmp.ne.s32.totalorder %s87, %s89
      %p96 = scmp.eq.s32.totalorder %s23, 3
      %p97 = por %p95, %p96
      %p98 = scmp.ne.s32.totalorder %s89, %s90
      %p99 = scmp.eq.s32.totalorder %s23, 0
      %p100 = por %p98, %p99
      %p101 = scmp.ne.s32.totalorder %s89, %s90
      %p102 = scmp.eq.s32.totalorder %s24, 3
      %p103 = por %p101, %p102
      %p105 = scmp.ne.s32.totalorder %s90, %s104
      %p106 = scmp.eq.s32.totalorder %s24, 0
      %p107 = por %p105, %p106
      %s109 = sadd.s32 %s108, 1
      %p112 = scmp.eq.s32.totalorder %s18, 3
      %p113 = scmp.ne.s32.totalorder %s108, %s110
      %p114 = scmp.eq.s32.totalorder %s18, 0
      %p115 = por %p113, %p114
      %p116 = scmp.ne.s32.totalorder %s108, %s110
      %p117 = scmp.eq.s32.totalorder %s23, 3
      %p118 = por %p116, %p117
      %p119 = scmp.ne.s32.totalorder %s110, %s111
      %p120 = scmp.eq.s32.totalorder %s23, 0
      %p121 = por %p119, %p120
      %p122 = scmp.ne.s32.totalorder %s110, %s111
      %p123 = scmp.eq.s32.totalorder %s24, 3
      %p124 = por %p122, %p123
      %p126 = scmp.ne.s32.totalorder %s111, %s125
      %p127 = scmp.eq.s32.totalorder %s24, 0
      %p128 = por %p126, %p127
      %s130 = sadd.s32 %s129, 1
      %p133 = scmp.eq.s32.totalorder %s18, 3
      %p134 = scmp.ne.s32.totalorder %s129, %s131
      %p135 = scmp.eq.s32.totalorder %s18, 0
      %p136 = por %p134, %p135
      %p137 = scmp.ne.s32.totalorder %s129, %s131
      %p138 = scmp.eq.s32.totalorder %s23, 3
      %p139 = por %p137, %p138
      %p140 = scmp.ne.s32.totalorder %s131, %s132
      %p141 = scmp.eq.s32.totalorder %s23, 0
      %p142 = por %p140, %p141
      %p143 = scmp.ne.s32.totalorder %s131, %s132
      %p144 = scmp.eq.s32.totalorder %s24, 3
      %p145 = por %p143, %p144
      %p147 = scmp.ne.s32.totalorder %s132, %s146
      %p148 = scmp.eq.s32.totalorder %s24, 0
      %p149 = por %p147, %p148
      %s150 = ssub.s32 %s25, %s37
      %s151 = ssub.s32 %s26, %s33
      %s152 = sor.u32 %s150, %s151
      %p153 = scmp.eq.s32.totalorder %s152, 0
      %s155 = sadd.s32 %s154, 1
      %s156 = scalar_select %p153, %s154, %s155
      %p159 = pneg %p153
      %p160 = scmp.eq.s32.totalorder %s18, 3
      %p161 = por %p159, %p160
      %p162 = scmp.ne.s32.totalorder %s154, %s157
      %p163 = scmp.eq.s32.totalorder %s18, 0
      %p164 = por %p162, %p163
      %p165 = scmp.ne.s32.totalorder %s154, %s157
      %p166 = scmp.eq.s32.totalorder %s23, 3
      %p167 = por %p165, %p166
      %p168 = scmp.ne.s32.totalorder %s157, %s158
      %p169 = scmp.eq.s32.totalorder %s23, 0
      %p170 = por %p168, %p169
      %p171 = scmp.ne.s32.totalorder %s157, %s158
      %p172 = scmp.eq.s32.totalorder %s24, 3
      %p173 = por %p171, %p172
      %p175 = scmp.ne.s32.totalorder %s158, %s174
      %p176 = scmp.eq.s32.totalorder %s24, 0
      %p177 = por %p175, %p176
      %p178 = scmp.le.s32.totalorder 1, %s18
      %p179 = scmp.lt.s32.totalorder %s18, 5
      %p180 = pnand %p178, %p179
      %p181 = pneg %p180
      // Predicated region
      $region9: #{tpu_custom_call.1} parent=5 // pred_check
        _
      $region10: #{tpu_custom_call.1} parent=5 // pred_check_branch
        %183 = sbr.rel (%p180) target = $region12
      $region11: #{tpu_custom_call.1} parent=5 // pred_region
        %s184 = ssub.s32 %s18, 1
        // Predicated region
        $region13: #{tpu_custom_call.1} parent=11 // pred_check
          %p185 = pneg %p79
        $region14: #{tpu_custom_call.1} parent=11 // pred_check_branch
          %187 = sbr.rel (%p185) target = $region16
        $region15: #{tpu_custom_call.1} parent=11 // pred_region
          %189 = vsyncadd [#allocation6], 0
          %s191 = sshll.u32 %s1, 4
          %s192 = int_to_ptr.hbm [resolvable:$true] %s191
          %s193 = sshll.u32 [#allocation5], 4
          %s194 = int_to_ptr.vmem [resolvable:$true] %s193
          %196 = dma.hbm_to_vmem [thread:$0]  %s192, 16, %s194, [#allocation6]
        $region16: #{tpu_custom_call.1} parent=11 // pred_fallthru
          _
        // Predicated region
        $region17: #{tpu_custom_call.1} parent=11 // pred_check
          %p197 = pneg %p100
        $region18: #{tpu_custom_call.1} parent=11 // pred_check_branch
          %199 = sbr.rel (%p197) target = $region20
        $region19: #{tpu_custom_call.1} parent=11 // pred_region
          _
        $region20: #{tpu_custom_call.1} parent=11 // pred_fallthru
          _
        // Predicated region
        $region21: #{tpu_custom_call.1} parent=11 // pred_check
          %p200 = pneg %p121
        $region22: #{tpu_custom_call.1} parent=11 // pred_check_branch
          %202 = sbr.rel (%p200) target = $region24
        $region23: #{tpu_custom_call.1} parent=11 // pred_region
          %204 = vsyncadd [#allocation6], 0
          %s205 = sshll.u32 %s3, 4
          %s206 = int_to_ptr.hbm [resolvable:$true] %s205
          %s207 = sshll.u32 [#allocation7], 4
          %s208 = int_to_ptr.vmem [resolvable:$true] %s207
          %213 = dma.hbm_to_vmem [thread:$0]  %s206, 1024, %s208, [#allocation6], 128, 128, 8
        $region24: #{tpu_custom_call.1} parent=11 // pred_fallthru
          _
        // Predicated region
        $region25: #{tpu_custom_call.1} parent=11 // pred_check
          %p214 = pneg %p142
        $region26: #{tpu_custom_call.1} parent=11 // pred_check_branch
          %216 = sbr.rel (%p214) target = $region28
        $region27: #{tpu_custom_call.1} parent=11 // pred_region
          _
        $region28: #{tpu_custom_call.1} parent=11 // pred_fallthru
          _
      $region12: #{tpu_custom_call.1} parent=5 // pred_fallthru
        _
      %p217 = scmp.lt.s32.totalorder %s18, 4
      // Predicated region
      $region29: #{tpu_custom_call.1} parent=5 // pred_check
        %p218 = pneg %p217
      $region30: #{tpu_custom_call.1} parent=5 // pred_check_branch
        %220 = sbr.rel (%p218) target = $region32
      $region31: #{tpu_custom_call.1} parent=5 // pred_region
        // Predicated region
        $region33: #{tpu_custom_call.1} parent=31 // pred_check
          %p221 = pneg %p52
        $region34: #{tpu_custom_call.1} parent=31 // pred_check_branch
          %223 = sbr.rel (%p221) target = $region36
        $region35: #{tpu_custom_call.1} parent=31 // pred_region
          %s224 = sand.u32 %s42, 1
          %s225 = scalar_lea.sflag [#allocation3], %s224
          %s226 = sand.u32 %s42, 1
          %s227 = smul.addr %s226, 16
          %s228 = scalar_lea.vmem [#allocation2], %s227
          %s229 = smul.u32 2, %s26
          %231 = vsyncadd %s225, 0
          %s232 = smul.addr %s25, 4
          %s233 = sadd.s32 %s229, %s232
          %s234 = smul.addr %s233, 8
          %s235 = scalar_lea.hbm %s0, %s234
          %s236 = sshll.u32 %s235, 4
          %s237 = int_to_ptr.hbm [resolvable:$true] %s236
          %s238 = sshll.u32 %s228, 4
          %s239 = int_to_ptr.vmem [resolvable:$true] %s238
          %244 = dma.hbm_to_vmem [thread:$0]  %s237, 256, %s239, %s225, 128, 128, 8
        $region36: #{tpu_custom_call.1} parent=31 // pred_fallthru
          _
      $region32: #{tpu_custom_call.1} parent=5 // pred_fallthru
        _
      %p245 = scmp.le.s32.totalorder 1, %s18
      %p246 = scmp.lt.s32.totalorder %s18, 5
      %p247 = pnand %p245, %p246
      %p248 = pneg %p247
      // Predicated region
      $region37: #{tpu_custom_call.1} parent=5 // pred_check
        _
      $region38: #{tpu_custom_call.1} parent=5 // pred_check_branch
        %250 = sbr.rel (%p247) target = $region40
      $region39: #{tpu_custom_call.1} parent=5 // pred_region
        %s251 = ssub.s32 %s18, 1
        %s252 = sand.u32 %s45, 1
        %s253 = scalar_lea.sflag [#allocation3], %s252
        %s254 = sand.u32 %s45, 1
        %s255 = smul.addr %s254, 16
        %s256 = scalar_lea.vmem [#allocation2], %s255
        // Predicated region
        $region41: #{tpu_custom_call.1} parent=39 // pred_check
          %p257 = pneg %p58
        $region42: #{tpu_custom_call.1} parent=39 // pred_check_branch
          %259 = sbr.rel (%p257) target = $region44
        $region43: #{tpu_custom_call.1} parent=39 // pred_region
          %261 = dma.done %s253, 256
        $region44: #{tpu_custom_call.1} parent=39 // pred_fallthru
          _
        // Predicated region
        $region45: #{tpu_custom_call.1} parent=39 // pred_check
          %p262 = pneg %p79
        $region46: #{tpu_custom_call.1} parent=39 // pred_check_branch
          %264 = sbr.rel (%p262) target = $region48
        $region47: #{tpu_custom_call.1} parent=39 // pred_region
          %266 = dma.done [#allocation6], 16
        $region48: #{tpu_custom_call.1} parent=39 // pred_fallthru
          _
        // Predicated region
        $region49: #{tpu_custom_call.1} parent=39 // pred_check
          %p267 = pneg %p121
        $region50: #{tpu_custom_call.1} parent=39 // pred_check_branch
          %269 = sbr.rel (%p267) target = $region52
        $region51: #{tpu_custom_call.1} parent=39 // pred_region
          %271 = dma.done [#allocation6], 1024
        $region52: #{tpu_custom_call.1} parent=39 // pred_fallthru
          _
        %s272 = sand.u32 %s45, 1
        %s273 = scalar_lea.sflag [#allocation3], %s272
        %s274 = sand.u32 %s45, 1
        %s275 = smul.addr %s274, 16
        %s276 = scalar_lea.vmem [#allocation2], %s275
        %p277 = pneg %p58
        %p278 = pneg %p55
        %p279 = pneg %p79
        %p280 = pneg %p76
        %p281 = pneg %p100
        %p282 = pneg %p97
        %p283 = pneg %p121
        %p284 = pneg %p118
        %p285 = pneg %p142
        %p286 = pneg %p139
        %p287 = pneg %p170
        %p288 = pneg %p167
        %s289 = sand.u32 %s157, 1
        %s290 = scalar_lea.sflag [#allocation4], %s289
        %s291 = sand.u32 %s157, 1
        %s292 = smul.addr %s291, 16
        %s293 = scalar_lea.vmem [#allocation8], %s292
        %s294 = smul.u32 2, %s28
        %s295 = smul.u32 2, %s28
        %v297 = vld [vmem:[%s256] sm:$0xff]
        %v298 = vld [vmem:[%s256 + $0x8] sm:$0xff]
        %v299 = vld [vmem:[#allocation5] sm:$0x1]
        %v300 = vld [vmem:[%s2] sm:$0x1]
        %vm301 = vcmask 523264
        %v302 = vsel %vm301, %v297, 0.0
        %303 = vadd.xlane.f32.xlu0 %v302
        %v304 = vpop.xlane.xlu0 %303
        %v305 = vsel %vm301, %v298, 0.0
        %306 = vadd.xlane.f32.xlu0 %v305
        %v307 = vpop.xlane.xlu0 %306
        %v308 = vrcp.pop 64.0
        %v309 = vmul.f32 64.0, %v308
        %v310 = vsub.f32 1.0, %v309
        %v311 = vmul.f32 %v308, %v310
        %v312 = vadd.f32 %v308, %v311
        %vm313 = vweird.f32 %v308
        %v314 = vsel %vm313, %v308, %v312
        %v315 = vmul.f32 %v304, %v314
        %v316 = vmul.f32 %v307, %v314
        %v317 = vmul.f32 %v297, %v297
        %v318 = vmul.f32 %v298, %v298
        %v319 = vsel %vm301, %v317, 0.0
        %320 = vadd.xlane.f32.xlu0 %v319
        %v321 = vpop.xlane.xlu0 %320
        %v322 = vsel %vm301, %v318, 0.0
        %323 = vadd.xlane.f32.xlu0 %v322
        %v324 = vpop.xlane.xlu0 %323
        %v325 = vmul.f32 %v321, %v314
        %v326 = vmul.f32 %v324, %v314
        %v327 = vmul.f32 %v315, %v315
        %v328 = vmul.f32 %v316, %v316
        %v329 = vsub.f32 %v325, %v327
        %v330 = vsub.f32 %v326, %v328
        %v331 = vsub.f32 %v297, %v315
        %v332 = vsub.f32 %v298, %v316
        %v333 = vadd.f32 %v329, 1e-05
        %v334 = vadd.f32 %v330, 1e-05
        %v335 = vrsqrt.pop %v333
        %v336 = vmul.f32 %v335, %v333
        %v337 = vmul.f32 %v336, %v335
        %v338 = vmul.f32 0.5, %v337
        %v339 = vsub.f32 1.5, %v338
        %v340 = vmul.f32 %v335, %v339
        %vm341 = vweird.f32 %v333
        %vm342 = vweird.f32 %v335
        %vm343 = vmor %vm341, %vm342
        %v344 = vsel %vm343, %v335, %v340
        %v345 = vrsqrt.pop %v334
        %v346 = vmul.f32 %v345, %v334
        %v347 = vmul.f32 %v346, %v345
        %v348 = vmul.f32 0.5, %v347
        %v349 = vsub.f32 1.5, %v348
        %v350 = vmul.f32 %v345, %v349
        %vm351 = vweird.f32 %v334
        %vm352 = vweird.f32 %v345
        %vm353 = vmor %vm351, %vm352
        %v354 = vsel %vm353, %v345, %v350
        %v355 = vmul.f32 %v331, %v344
        %v356 = vmul.f32 %v332, %v354
        %v358 = vperm.slane %v299, 0
        %v360 = vmul.f32 %v355, %v358
        %v361 = vmul.f32 %v356, %v358
        %v363 = vperm.slane %v300, 0
        %v365 = vadd.f32 %v360, %v363
        %v366 = vadd.f32 %v361, %v363
        %v367 = vpack.c.bf16 %v366, %v365
        %v368 = vld [vmem:[#allocation7] sm:$0xff]
        %v369 = vld [vmem:[#allocation7 + $0x8] sm:$0xff]
        %v370 = vld [vmem:[#allocation7 + $0x10] sm:$0xff]
        %v371 = vld [vmem:[#allocation7 + $0x18] sm:$0xff]
        %v372 = vld [vmem:[#allocation7 + $0x20] sm:$0xff]
        %v373 = vld [vmem:[#allocation7 + $0x28] sm:$0xff]
        %v374 = vld [vmem:[#allocation7 + $0x30] sm:$0xff]
        %v375 = vld [vmem:[#allocation7 + $0x38] sm:$0xff]
        %v376 = vld [vmem:[%s4] sm:$0x3]
        %v378 = vperm.slane %v376, 0
        %v379 = vperm.slane %v376, 1
        %v390 = vunpack.c.l.b16 %v368
        %v391 = vunpack.c.h.b16 %v368
        %v392 = vunpack.c.l.b16 %v369
        %v393 = vunpack.c.h.b16 %v369
        %v394 = vunpack.c.l.b16 %v370
        %v395 = vunpack.c.h.b16 %v370
        %v396 = vunpack.c.l.b16 %v371
        %v397 = vunpack.c.h.b16 %v371
        %v398 = vunpack.c.l.b16 %v372
        %v399 = vunpack.c.h.b16 %v372
        %v400 = vunpack.c.l.b16 %v373
        %v401 = vunpack.c.h.b16 %v373
        %v402 = vunpack.c.l.b16 %v374
        %v403 = vunpack.c.h.b16 %v374
        %v404 = vunpack.c.l.b16 %v375
        %v405 = vunpack.c.h.b16 %v375
        %v406 = vpack.c.b16 %v392, %v390
        %v407 = vpack.c.b16 %v393, %v391
        %v408 = vpack.c.b16 %v396, %v394
        %v409 = vpack.c.b16 %v397, %v395
        %v410 = vpack.c.b16 %v400, %v398
        %v411 = vpack.c.b16 %v401, %v399
        %v412 = vpack.c.b16 %v404, %v402
        %v413 = vpack.c.b16 %v405, %v403
        %v423 = vsel %vm301, %v367, 0
        %425 = vmatpush.bf16.msra.mxu0 0
        %426 = vmatpush.bf16.msra.mxu0 0
        %427 = vmatpush.bf16.msra.mxu0 0
        %428 = vmatpush.bf16.msra.mxu0 0
        %429 = vmatpush.bf16.msra.mxu0 %v412
        %430 = vmatpush.bf16.msra.mxu0 %v410
        %431 = vmatpush.bf16.msra.mxu0 %v408
        %432 = vmatpush.bf16.msra.mxu0 %v406
        %433 = vmatmul.bf16.gmra.mxu0 %v423
        %v434 = vpop.f32.mrf.mxu0
        %v435 = vadd.f32 %v378, %v434
        %v436 = vpop.f32.mrf.mxu0
        %v437 = vadd.f32 %v378, %v436
        %438 = vdwg.mxu0
        %439 = vmatpush.bf16.msra.mxu0 0
        %440 = vmatpush.bf16.msra.mxu0 0
        %441 = vmatpush.bf16.msra.mxu0 0
        %442 = vmatpush.bf16.msra.mxu0 0
        %443 = vmatpush.bf16.msra.mxu0 %v413
        %444 = vmatpush.bf16.msra.mxu0 %v411
        %445 = vmatpush.bf16.msra.mxu0 %v409
        %446 = vmatpush.bf16.msra.mxu0 %v407
        %447 = vmatmul.bf16.gmra.mxu0 %v423
        %v448 = vpop.f32.mrf.mxu0
        %v449 = vadd.f32 %v379, %v448
        %v450 = vpop.f32.mrf.mxu0
        %v451 = vadd.f32 %v379, %v450
        %452 = vdwg.mxu0
        %v453 = vpack.c.bf16 %v449, %v435
        %v454 = vpack.c.bf16 %v451, %v437
        %vm455 = vcmask 1043456
        %vm456 = vcmask 523268
        %vm457 = vmor %vm456, %vm455
        %458 = vst.msk [vmem:[%s293] sm:$0xff] %vm457, %v453
        %459 = vst.msk [vmem:[%s293 + $0x8] sm:$0xff] %vm457, %v454
        %s460 = sand.u32 %s157, 1
        %s461 = scalar_lea.sflag [#allocation4], %s460
        %s462 = sand.u32 %s157, 1
        %s463 = smul.addr %s462, 16
        %s464 = scalar_lea.vmem [#allocation8], %s463
        // Predicated region
        $region53: #{tpu_custom_call.1} parent=39 // pred_check
          %p465 = pneg %p167
        $region54: #{tpu_custom_call.1} parent=39 // pred_check_branch
          %467 = sbr.rel (%p465) target = $region56
        $region55: #{tpu_custom_call.1} parent=39 // pred_region
          %s468 = smul.u32 2, %s28
          %470 = vsyncadd %s461, 0
          %s471 = smul.addr %s468, 2
          %s472 = smul.addr %s27, 8
          %s473 = sadd.s32 %s471, %s472
          %s474 = smul.addr %s473, 4
          %s475 = scalar_lea.hbm %s5, %s474
          %s476 = sshll.u32 %s464, 4
          %s477 = int_to_ptr.vmem [resolvable:$true] %s476
          %s478 = sshll.u32 %s475, 4
          %s479 = int_to_ptr.hbm [resolvable:$true] %s478
          %484 = dma.vmem_to_hbm [thread:$0]  %s477, 256, %s479, %s461, 128, 128, 8
        $region56: #{tpu_custom_call.1} parent=39 // pred_fallthru
          _
      $region40: #{tpu_custom_call.1} parent=5 // pred_fallthru
        _
      %p485 = scmp.le.s32.totalorder 2, %s18
      // Predicated region
      $region57: #{tpu_custom_call.1} parent=5 // pred_check
        %p486 = pneg %p485
      $region58: #{tpu_custom_call.1} parent=5 // pred_check_branch
        %488 = sbr.rel (%p486) target = $region60
      $region59: #{tpu_custom_call.1} parent=5 // pred_region
        %s489 = ssub.s32 %s18, 2
        // Predicated region
        $region61: #{tpu_custom_call.1} parent=59 // pred_check
          %p490 = pneg %p173
        $region62: #{tpu_custom_call.1} parent=59 // pred_check_branch
          %492 = sbr.rel (%p490) target = $region64
        $region63: #{tpu_custom_call.1} parent=59 // pred_region
          %s493 = sand.u32 %s158, 1
          %s494 = scalar_lea.sflag [#allocation4], %s493
          %s495 = sand.u32 %s158, 1
          %s496 = smul.addr %s495, 16
          %s497 = scalar_lea.vmem [#allocation8], %s496
          %499 = dma.done %s494, 256
        $region64: #{tpu_custom_call.1} parent=59 // pred_fallthru
          _
      $region60: #{tpu_custom_call.1} parent=5 // pred_fallthru
        _
    $region6: #{tpu_custom_call.1} parent=1 // loop_footer
      %s22 = sadd.s32 1, %s18
    $region7: #{tpu_custom_call.1} parent=1 // loop_footer_branch
      %17 = sbr.rel target = $region3
    $region8: #{tpu_custom_call.1} parent=1 // loop_exit
      _
    %500 = vsyncpa [#allocation3], 1
    %s501 = scalar_lea.sflag [#allocation3], 1
    %502 = vsyncpa %s501, 1
    %503 = vsyncpa [#allocation6], 1
    %504 = vsyncpa [#allocation4], 1
    %s505 = scalar_lea.sflag [#allocation4], 1
    %506 = vsyncpa %s505, 1

</llo_original>
